<compile_context>
chip_gen: v5e
topology: v5e:2x2
jax: 0.10.0
libtpu: 0.0.40
codegen_flags: <defaults>
</compile_context>

<pallas_src>
import functools

import jax
import jax.numpy as jnp
from jax import lax
from jax.experimental import pallas as pl
from jax.experimental.pallas import tpu as pltpu


# ------------------------------- helpers ------------------------------------

def _pick_tile(m, target):
    """Largest row-tile <= target that divides m and is a multiple of 8 (or m itself)."""
    if m <= target:
        return m
    t = (target // 8) * 8
    while t >= 8:
        if m % t == 0:
            return t
        t -= 8
    return m


# ------------------- fused linear projection with in-kernel split ------------

def _linear_split_kernel(x_ref, w_ref, b_ref, *o_refs, splits):
    acc = jnp.dot(x_ref[...].astype(jnp.bfloat16), w_ref[...].astype(jnp.bfloat16),
                  preferred_element_type=jnp.float32) + b_ref[...]
    off = 0
    for o_ref, n in zip(o_refs, splits):
        o_ref[...] = acc[:, off:off + n].astype(o_ref.dtype)
        off += n


def fused_linear_split(x2d, w, b, splits, *, tile_m=512):
    """x2d:(M,K) @ w:(K,N) + b, with the N dim split into len(splits) output tensors.

    Avoids the HBM round-trip of slicing a fused QKV projection in XLA.
    """
    M, K = x2d.shape
    N = w.shape[1]
    assert sum(splits) == N
    tm = _pick_tile(M, tile_m)
    kern = functools.partial(_linear_split_kernel, splits=tuple(splits))
    outs = pl.pallas_call(
        kern,
        grid=(M // tm,),
        in_specs=[
            pl.BlockSpec((tm, K), lambda i: (i, 0)),
            pl.BlockSpec((K, N), lambda i: (0, 0)),   # weight resident across M tiles
            pl.BlockSpec((1, N), lambda i: (0, 0)),
        ],
        out_specs=[pl.BlockSpec((tm, n), lambda i: (i, 0)) for n in splits],
        out_shape=[jax.ShapeDtypeStruct((M, n), x2d.dtype) for n in splits],
        compiler_params=pltpu.CompilerParams(dimension_semantics=("parallel",)),
    )(x2d, w, b.reshape(1, N))
    return outs


# --------------------- fused multi-head attention kernel ---------------------

def _mha_kernel(q_ref, k_ref, v_ref, m_ref, o_ref, a_ref, *, n_head, d_k, d_v, scale):
    # grid = (batch, Lq tiles).  Heads are packed as a leading batch dim so softmax /
    # masking / matmuls run on dense (H, tq, Lk) tiles and stores are lane-dense.
    tq = q_ref.shape[1]
    Lk = k_ref.shape[1]
    q = q_ref[0].astype(jnp.float32) * scale          # (tq, H*dk); scale hoisted, applied once
    k = k_ref[0].astype(jnp.float32)                  # (Lk, H*dk)
    v = v_ref[0].astype(jnp.float32)                  # (Lk, H*dv)
    mask = m_ref[0] > 0.5                             # (Lm, Lk); Lm in {1, tq}; True == masked

    # head-major stacking (H, tq, dk) / (H, Lk, dk) / (H, Lk, dv); bf16 MXU inputs.
    qh = jnp.transpose(q.reshape(tq, n_head, d_k), (1, 0, 2)).astype(jnp.bfloat16)
    kh = jnp.transpose(k.reshape(Lk, n_head, d_k), (1, 0, 2)).astype(jnp.bfloat16)
    vh = jnp.transpose(v.reshape(Lk, n_head, d_v), (1, 0, 2)).astype(jnp.bfloat16)

    s = jnp.einsum('hqd,hkd->hqk', qh, kh,
                   preferred_element_type=jnp.float32)            # (H, tq, Lk)
    s = jnp.where(mask[None], jnp.float32(-1e30), s)              # finite: no NaN on full-mask
    s = s - jnp.max(s, axis=-1, keepdims=True)
    e = jnp.exp(s)
    p = e * pl.reciprocal(jnp.sum(e, axis=-1, keepdims=True), approx=True)

    # single lane-dense attn store in PyTorch head-major layout (H, 1, tq, Lk)
    a_ref[...] = p[:, None, :, :].astype(a_ref.dtype)

    o = jnp.einsum('hqk,hkd->hqd', p.astype(jnp.bfloat16), vh,
                   preferred_element_type=jnp.float32)            # (H, tq, dv)
    # single lane-dense store of the head-concatenated output (tq, H*dv)
    o_ref[0] = jnp.transpose(o, (1, 0, 2)).reshape(tq, n_head * d_v).astype(o_ref.dtype)


def fused_attention(qp, kp, vp, mask, n_head, d_k, d_v, *, tile_q=256):
    """qp:(B,Lq,H*dk) kp:(B,Lk,H*dk) vp:(B,Lk,H*dv), mask broadcastable (Bm,Lm,Lk).

    Returns (merged_out (B,Lq,H*dv), attn (H*B,Lq,Lk)) — attn already head-major,
    so the final reshape is free (no transpose).
    """
    B, Lq, _ = qp.shape
    _, Lk, _ = kp.shape
    Bm, Lm, _ = mask.shape
    tq = _pick_tile(Lq, tile_q)
    nq = Lq // tq

    def m_map(b, qi):
        bb = b if Bm != 1 else 0
        qq = qi if Lm != 1 else 0
        return (bb, qq, 0)

    kern = functools.partial(_mha_kernel, n_head=n_head, d_k=d_k, d_v=d_v,
                             scale=1.0 / (float(d_k) ** 0.5))
    out, attn = pl.pallas_call(
        kern,
        grid=(B, nq),
        in_specs=[
            pl.BlockSpec((1, tq, n_head * d_k), lambda b, qi: (b, qi, 0)),
            pl.BlockSpec((1, Lk, n_head * d_k), lambda b, qi: (b, 0, 0)),
            pl.BlockSpec((1, Lk, n_head * d_v), lambda b, qi: (b, 0, 0)),
            pl.BlockSpec((1, tq if Lm != 1 else 1, Lk), m_map),   # broadcast mask, not tiled per head
        ],
        out_specs=[
            pl.BlockSpec((1, tq, n_head * d_v), lambda b, qi: (b, qi, 0)),
            pl.BlockSpec((n_head, 1, tq, Lk), lambda b, qi: (0, b, qi, 0)),
        ],
        out_shape=[
            jax.ShapeDtypeStruct((B, Lq, n_head * d_v), qp.dtype),
            jax.ShapeDtypeStruct((n_head, B, Lq, Lk), jnp.float32),
        ],
        compiler_params=pltpu.CompilerParams(
            dimension_semantics=("parallel", "parallel")),
    )(qp, kp, vp, mask)
    # TODO(synk): add a flag to skip the attn output when the caller does not consume it.
    attn = attn.reshape(n_head * B, Lq, Lk)   # contiguous -> free
    return out, attn


# ------------------ fused fc + residual + LayerNorm + mask -------------------

def _fc_add_ln_mask_kernel(x_ref, w_ref, b_ref, res_ref, g_ref, be_ref, npm_ref, o_ref, *, eps):
    acc = jnp.dot(x_ref[...].astype(jnp.bfloat16), w_ref[...].astype(jnp.bfloat16),
                  preferred_element_type=jnp.float32) + b_ref[...]
    y = acc + res_ref[...].astype(jnp.float32)
    mu = jnp.mean(y, axis=-1, keepdims=True)
    var = jnp.mean((y - mu) ** 2, axis=-1, keepdims=True)
    out = (y - mu) * lax.rsqrt(var + eps) * g_ref[...] + be_ref[...]
    o_ref[...] = (out * npm_ref[...]).astype(o_ref.dtype)


def fc_add_ln_mask(x2d, w, b, res2d, gamma, beta, npm2d, eps=1e-5, tile_m=512):
    """LayerNorm(x2d @ w + b + res2d) * npm2d, M-tiled, weights resident."""
    M, K = x2d.shape
    D = w.shape[1]
    tm = _pick_tile(M, tile_m)
    kern = functools.partial(_fc_add_ln_mask_kernel, eps=eps)
    return pl.pallas_call(
        kern,
        grid=(M // tm,),
        in_specs=[
            pl.BlockSpec((tm, K), lambda i: (i, 0)),
            pl.BlockSpec((K, D), lambda i: (0, 0)),
            pl.BlockSpec((1, D), lambda i: (0, 0)),
            pl.BlockSpec((tm, D), lambda i: (i, 0)),
            pl.BlockSpec((1, D), lambda i: (0, 0)),
            pl.BlockSpec((1, D), lambda i: (0, 0)),
            pl.BlockSpec((tm, 1), lambda i: (i, 0)),
        ],
        out_specs=pl.BlockSpec((tm, D), lambda i: (i, 0)),
        out_shape=jax.ShapeDtypeStruct((M, D), x2d.dtype),
        compiler_params=pltpu.CompilerParams(dimension_semantics=("parallel",)),
    )(x2d, w, b.reshape(1, D), res2d, gamma.reshape(1, D), beta.reshape(1, D), npm2d)


# ---- two-input variant (removes the o1/o2 HBM concat in the enc attention) ----

def _fc2_add_ln_mask_kernel(x1_ref, x2_ref, w1_ref, w2_ref, b_ref, res_ref, g_ref, be_ref,
                            npm_ref, o_ref, *, eps):
    acc = jnp.dot(x1_ref[...].astype(jnp.bfloat16), w1_ref[...].astype(jnp.bfloat16),
                  preferred_element_type=jnp.float32)
    acc = acc + jnp.dot(x2_ref[...].astype(jnp.bfloat16), w2_ref[...].astype(jnp.bfloat16),
                        preferred_element_type=jnp.float32)
    y = acc + b_ref[...] + res_ref[...].astype(jnp.float32)
    mu = jnp.mean(y, axis=-1, keepdims=True)
    var = jnp.mean((y - mu) ** 2, axis=-1, keepdims=True)
    out = (y - mu) * lax.rsqrt(var + eps) * g_ref[...] + be_ref[...]
    o_ref[...] = (out * npm_ref[...]).astype(o_ref.dtype)


def fc2_add_ln_mask(x1, x2, w1, w2, b, res2d, gamma, beta, npm2d, eps=1e-5, tile_m=512):
    """LayerNorm(x1 @ w1 + x2 @ w2 + b + res2d) * npm2d  (== fc(concat(x1,x2)) ...)."""
    M, K1 = x1.shape
    K2 = x2.shape[1]
    D = w1.shape[1]
    tm = _pick_tile(M, tile_m)
    kern = functools.partial(_fc2_add_ln_mask_kernel, eps=eps)
    return pl.pallas_call(
        kern,
        grid=(M // tm,),
        in_specs=[
            pl.BlockSpec((tm, K1), lambda i: (i, 0)),
            pl.BlockSpec((tm, K2), lambda i: (i, 0)),
            pl.BlockSpec((K1, D), lambda i: (0, 0)),
            pl.BlockSpec((K2, D), lambda i: (0, 0)),
            pl.BlockSpec((1, D), lambda i: (0, 0)),
            pl.BlockSpec((tm, D), lambda i: (i, 0)),
            pl.BlockSpec((1, D), lambda i: (0, 0)),
            pl.BlockSpec((1, D), lambda i: (0, 0)),
            pl.BlockSpec((tm, 1), lambda i: (i, 0)),
        ],
        out_specs=pl.BlockSpec((tm, D), lambda i: (i, 0)),
        out_shape=jax.ShapeDtypeStruct((M, D), x1.dtype),
        compiler_params=pltpu.CompilerParams(dimension_semantics=("parallel",)),
    )(x1, x2, w1, w2, b.reshape(1, D), res2d, gamma.reshape(1, D), beta.reshape(1, D), npm2d)


# ---------------- fused FFN + residual + LayerNorm + mask --------------------

def _ffn_ln_mask_kernel(x_ref, w1_ref, b1_ref, w2_ref, b2_ref, g_ref, be_ref, npm_ref,
                        o_ref, *, eps):
    x = x_ref[...].astype(jnp.float32)
    h = jnp.dot(x.astype(jnp.bfloat16), w1_ref[...].astype(jnp.bfloat16),
                preferred_element_type=jnp.float32) + b1_ref[...]
    h = jnp.maximum(h, 0.0)
    o = jnp.dot(h.astype(jnp.bfloat16), w2_ref[...].astype(jnp.bfloat16),
                preferred_element_type=jnp.float32) + b2_ref[...]
    y = o + x                                            # residual
    mu = jnp.mean(y, axis=-1, keepdims=True)
    var = jnp.mean((y - mu) ** 2, axis=-1, keepdims=True)
    out = (y - mu) * lax.rsqrt(var + eps) * g_ref[...] + be_ref[...]
    o_ref[...] = (out * npm_ref[...]).astype(o_ref.dtype)


def ffn_ln_mask(x2d, w1, b1, w2, b2, gamma, beta, npm2d, eps=1e-5, tile_m=512):
    M, D = x2d.shape
    Di = w1.shape[1]
    tm = _pick_tile(M, tile_m)
    kern = functools.partial(_ffn_ln_mask_kernel, eps=eps)
    return pl.pallas_call(
        kern,
        grid=(M // tm,),
        in_specs=[
            pl.BlockSpec((tm, D), lambda i: (i, 0)),
            pl.BlockSpec((D, Di), lambda i: (0, 0)),
            pl.BlockSpec((1, Di), lambda i: (0, 0)),
            pl.BlockSpec((Di, D), lambda i: (0, 0)),
            pl.BlockSpec((1, D), lambda i: (0, 0)),
            pl.BlockSpec((1, D), lambda i: (0, 0)),
            pl.BlockSpec((1, D), lambda i: (0, 0)),
            pl.BlockSpec((tm, 1), lambda i: (i, 0)),
        ],
        out_specs=pl.BlockSpec((tm, D), lambda i: (i, 0)),
        out_shape=jax.ShapeDtypeStruct((M, D), x2d.dtype),
        compiler_params=pltpu.CompilerParams(dimension_semantics=("parallel",)),
    )(x2d, w1, b1.reshape(1, Di), w2, b2.reshape(1, D),
      gamma.reshape(1, D), beta.reshape(1, D), npm2d)


# --------------------------- module-level wiring ----------------------------

def multi_head_attention(p, x, mask, non_pad_mask, n_head, d_k, d_v):
    """Self-attention (q == k == v == x).  LayerNorm(fc(attn) + x) * non_pad_mask."""
    B, Lq, Dm = x.shape
    nqk, nv = n_head * d_k, n_head * d_v
    x2d = x.reshape(B * Lq, Dm)
    qp, kp, vp = fused_linear_split(x2d, p["w_qkv"], p["b_qkv"], (nqk, nqk, nv))
    out, attn = fused_attention(qp.reshape(B, Lq, nqk), kp.reshape(B, Lq, nqk),
                                vp.reshape(B, Lq, nv), mask, n_head, d_k, d_v)
    out2d = fc_add_ln_mask(out.reshape(B * Lq, nv), p["w_fc"], p["b_fc"], x2d,
                           p["ln_g"], p["ln_b"], non_pad_mask.reshape(B * Lq, 1))
    return out2d.reshape(B, Lq, Dm), attn


def multi_enc_attention(p, q, txt, syn, txt_mask, syn_mask, non_pad_mask,
                        n_txt, n_syn, d_k, d_v):
    B, Lq, Dm = q.shape
    Lt, Ls = txt.shape[1], syn.shape[1]
    q2d = q.reshape(B * Lq, Dm)

    q1p, q2p = fused_linear_split(q2d, p["w_q12"], p["b_q12"], (n_txt * d_k, n_syn * d_k))
    k1p, v1p = fused_linear_split(txt.reshape(B * Lt, Dm), p["w_kv1"], p["b_kv1"],
                                  (n_txt * d_k, n_txt * d_v))
    k2p, v2p = fused_linear_split(syn.reshape(B * Ls, Dm), p["w_kv2"], p["b_kv2"],
                                  (n_syn * d_k, n_syn * d_v))

    o1, txt_attn = fused_attention(q1p.reshape(B, Lq, n_txt * d_k),
                                   k1p.reshape(B, Lt, n_txt * d_k),
                                   v1p.reshape(B, Lt, n_txt * d_v),
                                   txt_mask, n_txt, d_k, d_v)
    o2, syn_attn = fused_attention(q2p.reshape(B, Lq, n_syn * d_k),
                                   k2p.reshape(B, Ls, n_syn * d_k),
                                   v2p.reshape(B, Ls, n_syn * d_v),
                                   syn_mask, n_syn, d_k, d_v)

    # fc(concat(o1,o2)) without the HBM concat: two in-kernel matmuls against the split weight.
    out2d = fc2_add_ln_mask(o1.reshape(B * Lq, n_txt * d_v), o2.reshape(B * Lq, n_syn * d_v),
                            p["w_fc1"], p["w_fc2"], p["b_fc"], q2d,
                            p["ln_g"], p["ln_b"], non_pad_mask.reshape(B * Lq, 1))
    return out2d.reshape(B, Lq, Dm), (txt_attn, syn_attn)


def pos_ffn(p, x, non_pad_mask):
    B, L, D = x.shape
    out = ffn_ln_mask(x.reshape(B * L, D), p["w1"], p["b1"], p["w2"], p["b2"],
                      p["ln_g"], p["ln_b"], non_pad_mask.reshape(B * L, 1))
    return out.reshape(B, L, D)


def multi_enc_decoder_layer(params, dec_input, txt_enc_output, syn_enc_output,
                            non_pad_mask, slf_attn_mask, dec_txt_attn_mask, dec_syn_attn_mask,
                            *, n_txt, n_syn, d_k, d_v):
    n_head = n_txt + n_syn
    dec_output, slf_attn = multi_head_attention(
        params["slf"], dec_input, slf_attn_mask, non_pad_mask, n_head, d_k, d_v)
    dec_output, (txt_attn, syn_attn) = multi_enc_attention(
        params["enc"], dec_output, txt_enc_output, syn_enc_output,
        dec_txt_attn_mask, dec_syn_attn_mask, non_pad_mask, n_txt, n_syn, d_k, d_v)
    dec_output = pos_ffn(params["ffn"], dec_output, non_pad_mask)
    return dec_output, (slf_attn, txt_attn, syn_attn)


# ------------------------------ parameter init ------------------------------

def init_params(key, d_model, d_inner, n_txt, n_syn, d_k, d_v):
    n_head = n_txt + n_syn
    keys = list(jax.random.split(key, 16))

    def lin(fan_in, fan_out):
        kw = keys.pop()
        w = jax.random.normal(kw, (fan_in, fan_out), jnp.float32) * (2.0 / (fan_in + fan_out)) ** 0.5
        # big weights stored bf16 (MXU inputs, halved DMA); biases/LN stay f32
        return w.astype(jnp.bfloat16), jnp.zeros((fan_out,), jnp.float32)

    # Self-attention: Q/K/V projection weights pre-concatenated (one fused matmul, split in-kernel).
    slf = {}
    w_qs, b_qs = lin(d_model, n_head * d_k)
    w_ks, b_ks = lin(d_model, n_head * d_k)
    w_vs, b_vs = lin(d_model, n_head * d_v)
    slf["w_qkv"] = jnp.concatenate([w_qs, w_ks, w_vs], axis=1)
    slf["b_qkv"] = jnp.concatenate([b_qs, b_ks, b_vs], axis=0)
    slf["w_fc"], slf["b_fc"] = lin(n_head * d_v, d_model)
    slf["ln_g"], slf["ln_b"] = jnp.ones((d_model,), jnp.float32), jnp.zeros((d_model,), jnp.float32)

    # Multi-encoder attention: q1|q2 fused, k1|v1 fused, k2|v2 fused; fc weight pre-split.
    enc = {}
    w_qs1, b_qs1 = lin(d_model, n_txt * d_k)
    w_qs2, b_qs2 = lin(d_model, n_syn * d_k)
    w_ks1, b_ks1 = lin(d_model, n_txt * d_k)
    w_vs1, b_vs1 = lin(d_model, n_txt * d_v)
    w_ks2, b_ks2 = lin(d_model, n_syn * d_k)
    w_vs2, b_vs2 = lin(d_model, n_syn * d_v)
    enc["w_q12"] = jnp.concatenate([w_qs1, w_qs2], axis=1)
    enc["b_q12"] = jnp.concatenate([b_qs1, b_qs2], axis=0)
    enc["w_kv1"] = jnp.concatenate([w_ks1, w_vs1], axis=1)
    enc["b_kv1"] = jnp.concatenate([b_ks1, b_vs1], axis=0)
    enc["w_kv2"] = jnp.concatenate([w_ks2, w_vs2], axis=1)
    enc["b_kv2"] = jnp.concatenate([b_ks2, b_vs2], axis=0)
    w_fc, b_fc = lin((n_txt + n_syn) * d_v, d_model)
    enc["w_fc1"] = w_fc[:n_txt * d_v]
    enc["w_fc2"] = w_fc[n_txt * d_v:]
    enc["b_fc"] = b_fc
    enc["ln_g"], enc["ln_b"] = jnp.ones((d_model,), jnp.float32), jnp.zeros((d_model,), jnp.float32)

    ffn = {}
    ffn["w1"], ffn["b1"] = lin(d_model, d_inner)   # Conv1d(d_model, d_inner, 1) == linear
    ffn["w2"], ffn["b2"] = lin(d_inner, d_model)   # Conv1d(d_inner, d_model, 1) == linear
    ffn["ln_g"], ffn["ln_b"] = jnp.ones((d_model,), jnp.float32), jnp.zeros((d_model,), jnp.float32)

    return {"slf": slf, "enc": enc, "ffn": ffn}


# ------------------------------------ main -----------------------------------

if __name__ == "__main__":
    B, Lq, Ltxt, Lsyn = 2, 8, 16, 8
    d_model, d_inner = 32, 64
    n_txt, n_syn, d_k, d_v = 2, 2, 8, 8

    key = jax.random.PRNGKey(0)
    kp, kd, kt, ks = jax.random.split(key, 4)
    params = init_params(kp, d_model, d_inner, n_txt, n_syn, d_k, d_v)

    dec_input = jax.random.normal(kd, (B, Lq, d_model), jnp.float32)
    txt_enc_output = jax.random.normal(kt, (B, Ltxt, d_model), jnp.float32)
    syn_enc_output = jax.random.normal(ks, (B, Lsyn, d_model), jnp.float32)

    # masks: 1.0 == masked out (PyTorch masked_fill convention); kept in broadcast form
    # (no B- or Lq-materialization in HBM); the attention kernel broadcasts internally.
    slf_attn_mask = jnp.triu(jnp.ones((Lq, Lq), jnp.float32), k=1)[None]        # (1, Lq, Lq)
    txt_pad = jnp.zeros((B, Ltxt), jnp.float32).at[1, Ltxt - 2:].set(1.0)
    syn_pad = jnp.zeros((B, Lsyn), jnp.float32).at[1, Lsyn - 1:].set(1.0)
    dec_txt_attn_mask = txt_pad[:, None, :]                                      # (B, 1, Ltxt)
    dec_syn_attn_mask = syn_pad[:, None, :]                                      # (B, 1, Lsyn)
    non_pad_mask = jnp.ones((B, Lq, 1), jnp.float32).at[1, Lq - 1, 0].set(0.0)

    dec_output, (slf_attn, txt_attn, syn_attn) = multi_enc_decoder_layer(
        params, dec_input, txt_enc_output, syn_enc_output,
        non_pad_mask, slf_attn_mask, dec_txt_attn_mask, dec_syn_attn_mask,
        n_txt=n_txt, n_syn=n_syn, d_k=d_k, d_v=d_v)

    jax.block_until_ready(dec_output)
    jax.block_until_ready(slf_attn)
    jax.block_until_ready(txt_attn)
    jax.block_until_ready(syn_attn)

    assert dec_output.shape == (B, Lq, d_model)
    assert slf_attn.shape == ((n_txt + n_syn) * B, Lq, Lq)
    assert txt_attn.shape == (n_txt * B, Lq, Ltxt)
    assert syn_attn.shape == (n_syn * B, Lq, Lsyn)
    assert bool(jnp.all(jnp.isfinite(dec_output)))
    assert bool(jnp.all(jnp.isfinite(slf_attn)))
    assert bool(jnp.all(jnp.isfinite(txt_attn)))
    assert bool(jnp.all(jnp.isfinite(syn_attn)))

    # TODO(synk): dropout layers are identity at inference and are intentionally omitted.
    print("KERNEL_OK")
</pallas_src>

<mosaic_0001>
module attributes {stable_mosaic.version = 11 : i64} {
  func.func @_linear_split_kernel(%arg0: i32, %arg1: memref<16x32xf32, #tpu.memory_space<vmem>>, %arg2: memref<32x96xbf16, #tpu.memory_space<vmem>>, %arg3: memref<1x96xf32, #tpu.memory_space<vmem>>, %arg4: memref<16x32xf32, #tpu.memory_space<vmem>>, %arg5: memref<16x32xf32, #tpu.memory_space<vmem>>, %arg6: memref<16x32xf32, #tpu.memory_space<vmem>>) attributes {dimension_semantics = [#tpu.dimension_semantics<parallel>], iteration_bounds = array<i64: 1>, scalar_prefetch = 0 : i64, scratch_operands = 0 : i64, tpu.core_type = #tpu.core_type<tc>, window_params = [{transform_indices = @transform_0, window_bounds = array<i64: 16, 32>}, {pipeline_mode = #tpu.pipeline_mode<synchronous>, transform_indices = @transform_1, window_bounds = array<i64: 32, 96>}, {pipeline_mode = #tpu.pipeline_mode<synchronous>, transform_indices = @transform_2, window_bounds = array<i64: 1, 96>}, {transform_indices = @transform_3, window_bounds = array<i64: 16, 32>}, {transform_indices = @transform_4, window_bounds = array<i64: 16, 32>}, {transform_indices = @transform_5, window_bounds = array<i64: 16, 32>}]} {
    %c0 = arith.constant 0 : index
    %c0_0 = arith.constant 0 : index
    %0 = vector.load %arg1[%c0, %c0_0] : memref<16x32xf32, #tpu.memory_space<vmem>>, vector<16x32xf32>
    %1 = arith.truncf %0 : vector<16x32xf32> to vector<16x32xbf16>
    %c0_1 = arith.constant 0 : index
    %c0_2 = arith.constant 0 : index
    %2 = vector.load %arg2[%c0_1, %c0_2] : memref<32x96xbf16, #tpu.memory_space<vmem>>, vector<32x96xbf16>
    %cst = arith.constant dense<0.000000e+00> : vector<16x96xf32>
    %3 = tpu.matmul %1, %2, %cst {dimension_numbers = #tpu.dot_dimension_numbers<[1], [0], [0], [1], [0, 0, 1, 1], [], []>} : vector<16x32xbf16>, vector<32x96xbf16>, vector<16x96xf32> -> vector<16x96xf32>
    %c0_3 = arith.constant 0 : index
    %c0_4 = arith.constant 0 : index
    %4 = vector.load %arg3[%c0_3, %c0_4] : memref<1x96xf32, #tpu.memory_space<vmem>>, vector<1x96xf32>
    %5 = vector.broadcast %4 : vector<1x96xf32> to vector<16x96xf32>
    %6 = arith.addf %3, %5 : vector<16x96xf32>
    %7 = vector.extract_strided_slice %6 {offsets = [0, 0], sizes = [16, 32], strides = [1, 1]} : vector<16x96xf32> to vector<16x32xf32>
    %c0_5 = arith.constant 0 : index
    %c0_6 = arith.constant 0 : index
    %8 = vector.load %arg4[%c0_5, %c0_6] : memref<16x32xf32, #tpu.memory_space<vmem>>, vector<16x32xf32>
    tpu.vector_store %arg4[%c0_5, %c0_6], %7 {strides = array<i32>} : memref<16x32xf32, #tpu.memory_space<vmem>>, vector<16x32xf32>,
    %9 = vector.extract_strided_slice %6 {offsets = [0, 32], sizes = [16, 32], strides = [1, 1]} : vector<16x96xf32> to vector<16x32xf32>
    %c0_7 = arith.constant 0 : index
    %c0_8 = arith.constant 0 : index
    %10 = vector.load %arg5[%c0_7, %c0_8] : memref<16x32xf32, #tpu.memory_space<vmem>>, vector<16x32xf32>
    tpu.vector_store %arg5[%c0_7, %c0_8], %9 {strides = array<i32>} : memref<16x32xf32, #tpu.memory_space<vmem>>, vector<16x32xf32>,
    %11 = vector.extract_strided_slice %6 {offsets = [0, 64], sizes = [16, 32], strides = [1, 1]} : vector<16x96xf32> to vector<16x32xf32>
    %c0_9 = arith.constant 0 : index
    %c0_10 = arith.constant 0 : index
    %12 = vector.load %arg6[%c0_9, %c0_10] : memref<16x32xf32, #tpu.memory_space<vmem>>, vector<16x32xf32>
    tpu.vector_store %arg6[%c0_9, %c0_10], %11 {strides = array<i32>} : memref<16x32xf32, #tpu.memory_space<vmem>>, vector<16x32xf32>,
    return
  }
  func.func @transform_0(%arg0: i32) -> (i32, i32) {
    %c0_i32 = arith.constant 0 : i32
    %c0_i32_0 = arith.constant 0 : i32
    return %arg0, %c0_i32 : i32, i32
  }
  func.func @transform_1(%arg0: i32) -> (i32, i32) {
    %c0_i32 = arith.constant 0 : i32
    %c0_i32_0 = arith.constant 0 : i32
    %c0_i32_1 = arith.constant 0 : i32
    return %c0_i32, %c0_i32_0 : i32, i32
  }
  func.func @transform_2(%arg0: i32) -> (i32, i32) {
    %c0_i32 = arith.constant 0 : i32
    %c0_i32_0 = arith.constant 0 : i32
    %c0_i32_1 = arith.constant 0 : i32
    return %c0_i32, %c0_i32_0 : i32, i32
  }
  func.func @transform_3(%arg0: i32) -> (i32, i32) {
    %c0_i32 = arith.constant 0 : i32
    %c0_i32_0 = arith.constant 0 : i32
    return %arg0, %c0_i32 : i32, i32
  }
  func.func @transform_4(%arg0: i32) -> (i32, i32) {
    %c0_i32 = arith.constant 0 : i32
    %c0_i32_0 = arith.constant 0 : i32
    return %arg0, %c0_i32 : i32, i32
  }
  func.func @transform_5(%arg0: i32) -> (i32, i32) {
    %c0_i32 = arith.constant 0 : i32
    %c0_i32_0 = arith.constant 0 : i32
    return %arg0, %c0_i32 : i32, i32
  }
}

</mosaic_0001>

<llo_original>
// kernel: tpu_custom_call.1
$region0: #{tpu_custom_call.1}
  #allocation0 [shape = 'u32[]', space=smem, size = 0x4, offset = 0x4, fixed_abs, tag = 'smem constant byte address 0x4 - core index']
  #allocation1 [shape = 'u32[72,128]{1,0:T(1,128)}', space=vmem, size = 0x9000, scoped, tag = 'internal scratch']
  %s0 = inlined_call_operand.hbm [shape: f32[16,32], index: 0, kind: input, shape index: {}]
  %s1 = inlined_call_operand.hbm [shape: bf16[32,96], index: 1, kind: input, shape index: {}]
  %s2 = inlined_call_operand.vmem [shape: f32[1,96], index: 2, kind: input, shape index: {}]
  %s3 = inlined_call_operand.hbm [shape: f32[16,32], index: 3, kind: output, shape index: {0}]
  %s4 = inlined_call_operand.hbm [shape: f32[16,32], index: 4, kind: output, shape index: {1}]
  %s5 = inlined_call_operand.hbm [shape: f32[16,32], index: 5, kind: output, shape index: {2}]
  %6 = xla_tuple %s3, %s4, %s5
  %s7 = sld [smem:[#allocation0]]
  $region46: #{tpu_custom_call.1} parent=0
    _
  %s9 = ssub.s32 1, %s7
  %s10 = scalar_select 0, %s9, %s7
  $region1: #{tpu_custom_call.1} parent=0
    #allocation2 [shape = 'u8[8192]{0}', space=vmem, size = 0x2000, scoped, tag = 'input window, operand 0, single buffered']
    #allocation3 [shape = 's32[1]{0}', space=sflag, size = 0x4, scoped, tag = 'scoped memory for tpu_custom_call.1']
    #allocation4 [shape = 's32[1]{0}', space=sflag, size = 0x4, scoped, tag = 'scoped memory for tpu_custom_call.1']
    #allocation5 [shape = 'u8[8192]{0}', space=vmem, size = 0x2000, scoped, tag = 'input window, operand 1, single buffered']
    #allocation6 [shape = 's32[1]{0}', space=sflag, size = 0x4, scoped, tag = 'scoped memory for tpu_custom_call.1']
    #allocation7 [shape = 'u8[8192]{0}', space=vmem, size = 0x2000, scoped, tag = 'output window, operand 0, single buffered']
    #allocation8 [shape = 'u8[8192]{0}', space=vmem, size = 0x2000, scoped, tag = 'output window, operand 1, single buffered']
    #allocation9 [shape = 's32[1]{0}', space=sflag, size = 0x4, scoped, tag = 'scoped memory for tpu_custom_call.1']
    #allocation10 [shape = 'u8[8192]{0}', space=vmem, size = 0x2000, scoped, tag = 'output window, operand 2, single buffered']
    %11 = vsyncpa [#allocation3], 0
    %12 = vsyncpa [#allocation6], 0
    %13 = vsyncpa [#allocation4], 0
    %14 = vsyncpa [#allocation9], 0
    // Predicated region
    $region2: #{tpu_custom_call.1} parent=1 // pred_check
      _
    $region3: #{tpu_custom_call.1} parent=1 // pred_check_branch
      %16 = sbr.rel (0) target = $region5
    $region4: #{tpu_custom_call.1} parent=1 // pred_region
      %18 = vsyncadd [#allocation3], 0
      %s19 = sshll.u32 %s0, 4
      %s20 = int_to_ptr.hbm [resolvable:$true] %s19
      %s21 = sshll.u32 [#allocation2], 4
      %s22 = int_to_ptr.vmem [resolvable:$true] %s21
      %27 = dma.hbm_to_vmem [thread:$0]  %s20, 256, %s22, [#allocation3], 128, 128, 8
    $region5: #{tpu_custom_call.1} parent=1 // pred_fallthru
      _
    // Predicated region
    $region6: #{tpu_custom_call.1} parent=1 // pred_check
      _
    $region7: #{tpu_custom_call.1} parent=1 // pred_check_branch
      %29 = sbr.rel (0) target = $region9
    $region8: #{tpu_custom_call.1} parent=1 // pred_region
      %31 = vsyncadd [#allocation6], 0
      %s32 = sshll.u32 %s1, 4
      %s33 = int_to_ptr.hbm [resolvable:$true] %s32
      %s34 = sshll.u32 [#allocation5], 4
      %s35 = int_to_ptr.vmem [resolvable:$true] %s34
      %40 = dma.hbm_to_vmem [thread:$0]  %s33, 256, %s35, [#allocation6], 64, 64, 4
    $region9: #{tpu_custom_call.1} parent=1 // pred_fallthru
      _
    // Predicated region
    $region10: #{tpu_custom_call.1} parent=1 // pred_check
      _
    $region11: #{tpu_custom_call.1} parent=1 // pred_check_branch
      %42 = sbr.rel (0) target = $region13
    $region12: #{tpu_custom_call.1} parent=1 // pred_region
      _
    $region13: #{tpu_custom_call.1} parent=1 // pred_fallthru
      _
    // Predicated region
    $region14: #{tpu_custom_call.1} parent=1 // pred_check
      _
    $region15: #{tpu_custom_call.1} parent=1 // pred_check_branch
      %44 = sbr.rel (0) target = $region17
    $region16: #{tpu_custom_call.1} parent=1 // pred_region
      %46 = dma.done [#allocation3], 256
    $region17: #{tpu_custom_call.1} parent=1 // pred_fallthru
      _
    // Predicated region
    $region18: #{tpu_custom_call.1} parent=1 // pred_check
      _
    $region19: #{tpu_custom_call.1} parent=1 // pred_check_branch
      %48 = sbr.rel (0) target = $region21
    $region20: #{tpu_custom_call.1} parent=1 // pred_region
      %50 = dma.done [#allocation6], 256
    $region21: #{tpu_custom_call.1} parent=1 // pred_fallthru
      _
    %v52 = vld [vmem:[#allocation2] sm:$0xff]
    %v53 = vld [vmem:[#allocation2 + $0x8] sm:$0xff]
    %v54 = vpack.c.bf16 %v53, %v52
    %v55 = vld [vmem:[#allocation5] sm:$0xf]
    %v56 = vld [vmem:[#allocation5 + $0x4] sm:$0xf]
    %v57 = vld [vmem:[#allocation5 + $0x8] sm:$0xf]
    %v58 = vld [vmem:[#allocation5 + $0xc] sm:$0xf]
    %v59 = vld [vmem:[%s2] sm:$0x1]
    %v61 = vperm.slane %v59, 0
    %v67 = vunpack.c.l.b16 %v55
    %v68 = vunpack.c.l.b16 %v56
    %v69 = vunpack.c.l.b16 %v57
    %v70 = vunpack.c.l.b16 %v58
    %v71 = vpack.c.b16 %v68, %v67
    %v72 = vpack.c.b16 %v70, %v69
    %vm75 = vcmask 261120
    %v77 = vsel %vm75, %v54, 0
    %79 = vmatpush.bf16.msra.mxu0 0
    %80 = vmatpush.bf16.msra.mxu0 0
    %81 = vmatpush.bf16.msra.mxu0 0
    %82 = vmatpush.bf16.msra.mxu0 0
    %83 = vmatpush.bf16.msra.mxu0 0
    %84 = vmatpush.bf16.msra.mxu0 0
    %85 = vmatpush.bf16.msra.mxu0 %v72
    %86 = vmatpush.bf16.msra.mxu0 %v71
    %87 = vmatmul.bf16.gmra.mxu0 %v77
    %v88 = vpop.f32.mrf.mxu0
    %v89 = vadd.f32 %v61, %v88
    %v90 = vpop.f32.mrf.mxu0
    %v91 = vadd.f32 %v61, %v90
    %92 = vdwg.mxu0
    %93 = vst.msk [vmem:[#allocation7] sm:$0xff] %vm75, %v89
    %94 = vst.msk [vmem:[#allocation7 + $0x8] sm:$0xff] %vm75, %v91
    %97 = vrot.lane.b32.xlu0 %v89, 96
    %v98 = vpop.permute.xlu0 %97
    %99 = vrot.lane.b32.xlu0 %v91, 96
    %v100 = vpop.permute.xlu0 %99
    %103 = vst.msk [vmem:[#allocation8] sm:$0xff] %vm75, %v98
    %104 = vst.msk [vmem:[#allocation8 + $0x8] sm:$0xff] %vm75, %v100
    %105 = vrot.lane.b32.xlu0 %v89, 64
    %v106 = vpop.permute.xlu0 %105
    %107 = vrot.lane.b32.xlu0 %v91, 64
    %v108 = vpop.permute.xlu0 %107
    %111 = vst.msk [vmem:[#allocation10] sm:$0xff] %vm75, %v106
    %112 = vst.msk [vmem:[#allocation10 + $0x8] sm:$0xff] %vm75, %v108
    // Predicated region
    $region22: #{tpu_custom_call.1} parent=1 // pred_check
      _
    $region23: #{tpu_custom_call.1} parent=1 // pred_check_branch
      %114 = sbr.rel (0) target = $region25
    $region24: #{tpu_custom_call.1} parent=1 // pred_region
      %116 = vsyncadd [#allocation4], 0
      %s117 = sshll.u32 [#allocation7], 4
      %s118 = int_to_ptr.vmem [resolvable:$true] %s117
      %s119 = sshll.u32 %s3, 4
      %s120 = int_to_ptr.hbm [resolvable:$true] %s119
      %125 = dma.vmem_to_hbm [thread:$0]  %s118, 256, %s120, [#allocation4], 128, 128, 8
    $region25: #{tpu_custom_call.1} parent=1 // pred_fallthru
      _
    // Predicated region
    $region26: #{tpu_custom_call.1} parent=1 // pred_check
      _
    $region27: #{tpu_custom_call.1} parent=1 // pred_check_branch
      %127 = sbr.rel (0) target = $region29
    $region28: #{tpu_custom_call.1} parent=1 // pred_region
      %129 = vsyncadd [#allocation9], 0
      %s130 = sshll.u32 [#allocation8], 4
      %s131 = int_to_ptr.vmem [resolvable:$true] %s130
      %s132 = sshll.u32 %s4, 4
      %s133 = int_to_ptr.hbm [resolvable:$true] %s132
      %138 = dma.vmem_to_hbm [thread:$0]  %s131, 256, %s133, [#allocation9], 128, 128, 8
    $region29: #{tpu_custom_call.1} parent=1 // pred_fallthru
      _
    // Predicated region
    $region30: #{tpu_custom_call.1} parent=1 // pred_check
      _
    $region31: #{tpu_custom_call.1} parent=1 // pred_check_branch
      %140 = sbr.rel (0) target = $region33
    $region32: #{tpu_custom_call.1} parent=1 // pred_region
      %142 = vsyncadd [#allocation9], 0
      %s143 = sshll.u32 [#allocation10], 4
      %s144 = int_to_ptr.vmem [resolvable:$true] %s143
      %s145 = sshll.u32 %s5, 4
      %s146 = int_to_ptr.hbm [resolvable:$true] %s145
      %151 = dma.vmem_to_hbm [thread:$0]  %s144, 256, %s146, [#allocation9], 128, 128, 8
    $region33: #{tpu_custom_call.1} parent=1 // pred_fallthru
      _
    // Predicated region
    $region34: #{tpu_custom_call.1} parent=1 // pred_check
      _
    $region35: #{tpu_custom_call.1} parent=1 // pred_check_branch
      %153 = sbr.rel (0) target = $region37
    $region36: #{tpu_custom_call.1} parent=1 // pred_region
      %155 = dma.done [#allocation4], 256
    $region37: #{tpu_custom_call.1} parent=1 // pred_fallthru
      _
    // Predicated region
    $region38: #{tpu_custom_call.1} parent=1 // pred_check
      _
    $region39: #{tpu_custom_call.1} parent=1 // pred_check_branch
      %157 = sbr.rel (0) target = $region41
    $region40: #{tpu_custom_call.1} parent=1 // pred_region
      %159 = dma.done [#allocation9], 256
    $region41: #{tpu_custom_call.1} parent=1 // pred_fallthru
      _
    // Predicated region
    $region42: #{tpu_custom_call.1} parent=1 // pred_check
      _
    $region43: #{tpu_custom_call.1} parent=1 // pred_check_branch
      %161 = sbr.rel (0) target = $region45
    $region44: #{tpu_custom_call.1} parent=1 // pred_region
      %163 = dma.done [#allocation9], 256
    $region45: #{tpu_custom_call.1} parent=1 // pred_fallthru
      _
    %164 = vsyncpa [#allocation3], 1
    %165 = vsyncpa [#allocation6], 1
    %166 = vsyncpa [#allocation4], 1
    %167 = vsyncpa [#allocation9], 1

</llo_original>
